<compile_context>
chip_gen: v7x
topology: tpu7x:2x2x1
jax: 0.10.0
libtpu: 0.0.40
codegen_flags: <defaults>
</compile_context>

<pallas_src>
import jax
import jax.numpy as jnp
from jax.experimental import pallas as pl
from jax.experimental.pallas import tpu as pltpu


def _round_up(n, m):
    return ((n + m - 1) // m) * m


def _round_down_min(n, m):
    return max((n // m) * m, m)


def _feature_attention_kernel(x_ref, w1_ref, b1_ref, w2_ref, b2_ref, o_ref):
    # Matmul operands in the weights' dtype (bf16 by default), f32 accumulation
    # on the MXU; bias/ReLU/sigmoid/gating stay in f32 on the VPU/EUP.
    xm = x_ref[...].astype(w1_ref.dtype)
    h = jnp.dot(xm, w1_ref[...], preferred_element_type=jnp.float32) + b1_ref[...]
    h = jnp.maximum(h, 0.0)
    s = jnp.dot(h.astype(w2_ref.dtype), w2_ref[...],
                preferred_element_type=jnp.float32) + b2_ref[...]
    gate = jax.nn.sigmoid(s)
    # Re-read x for the gating product so the f32 tile is not held live across
    # both MXU sections (shorter live ranges, less vreg/spill pressure).
    o_ref[...] = (x_ref[...].astype(jnp.float32) * gate).astype(o_ref.dtype)
    # TODO(synk): for C < 128 the output store is a masked vst.msk (25% lane use
    # at C=32); a lane-dense repack ((TB, C) -> (TB*C/128, 128)) or channels-major
    # layout would fix it but needs an in-kernel relayout Mosaic may reject.


def prepare_feature_attention_params(w1, b1, w2, b2, matmul_dtype=jnp.bfloat16):
    """One-time parameter conversion — hoisted out of the per-call hot path.

    Returns (w1, b1, w2, b2) with weights in the matmul dtype (halves their DMA
    bytes) and biases as f32 row vectors the kernel keeps resident in VMEM.
    """
    C, H = w1.shape
    return (jnp.asarray(w1, matmul_dtype),
            jnp.asarray(b1, jnp.float32).reshape(1, H),
            jnp.asarray(w2, matmul_dtype),
            jnp.asarray(b2, jnp.float32).reshape(1, C))


def _vmem_ceiling_bytes():
    # Generation-aware VMEM budget: ~75% of physical leaves headroom for the
    # compiler's own scratch. Fallback of 48 MiB is safe on v7x (64 MiB/TC)
    # and conservative-but-plenty on v5e/v6e (128 MiB).
    try:
        cap = int(pltpu.get_tpu_info().vmem_capacity_bytes)
        if cap > 0:
            return (cap * 3) // 4
    except Exception:
        pass
    return 48 * 1024 * 1024


def feature_attention(x, w1, b1, w2, b2, *, block_rows=None,
                      tile_bytes_target=4 * 1024 * 1024):
    """Fused FeatureAttention: x * sigmoid(relu(x @ w1 + b1) @ w2 + b2).

    x: (..., C) channels-last. w1: (C, H), w2: (H, C) input-major. Pass the
    parameters through prepare_feature_attention_params() once; this function
    does NOT cast the weights per call (the matmul dtype follows w1/w2's dtype).
    For a further ~2x on this HBM-bound op, callers may pass/accept bf16 x.
    """
    orig_shape = x.shape
    C = orig_shape[-1]
    H = w1.shape[1]
    x2 = x.reshape(-1, C)
    B = x2.shape[0]
    io_item = jnp.dtype(x.dtype).itemsize

    # Tiny coercions only (biases); weights are used exactly as passed.
    b1f = jnp.asarray(b1, jnp.float32).reshape(1, H)
    b2f = jnp.asarray(b2, jnp.float32).reshape(1, C)

    # ---- VMEM budget & batch-tile sizing -------------------------------------
    ceiling = _vmem_ceiling_bytes()
    param_bytes = (w1.size * jnp.dtype(w1.dtype).itemsize
                   + w2.size * jnp.dtype(w2.dtype).itemsize
                   + (H + C) * 4)
    # Double-buffered x tile + double-buffered out tile, per batch row.
    bytes_per_row = C * (2 * io_item + 2 * io_item)
    margin = 2 * 1024 * 1024  # f32 intermediates + compiler scratch slack

    if block_rows is None:
        rows_from_target = max(tile_bytes_target // max(C * io_item, 1), 8)
        rows_from_budget = max((ceiling - param_bytes - margin) // bytes_per_row, 8)
        block_rows = min(rows_from_target, rows_from_budget)
    TB = min(int(block_rows), _round_up(B, 8))
    TB = _round_down_min(TB, 8)
    # v7x has 2 TensorCores: make sure the "parallel" grid axis has >= 2 tiles
    # whenever there is enough work to split (costs nothing on 1-TC v5e/v6e).
    if B >= 16 and pl.cdiv(B, TB) < 2:
        TB = _round_up(pl.cdiv(B, 2), 8)
    grid = (pl.cdiv(B, TB),)

    tile_io_bytes = TB * bytes_per_row
    scratch_bytes = TB * (H + 2 * C) * 4 + margin   # f32 h / s / gate temporaries
    vmem_limit = 2 * param_bytes + tile_io_bytes + scratch_bytes  # covers fallback
    vmem_limit = max(vmem_limit, 32 * 1024 * 1024)
    vmem_limit = min(int(vmem_limit), int(ceiling))
    # TODO(synk): if bf16 weights alone exceed the budget (very large C), add a
    # channel-tiling fallback instead of collapsing the batch tile.

    cost = pl.CostEstimate(
        flops=4 * B * C * H,                  # two (B,C,H)-sized matmuls
        transcendentals=B * C,                # sigmoid
        bytes_accessed=2 * B * C * io_item + param_bytes,   # x read + out write + params
    )

    def _run(single_buffer_params):
        def pspec(shape):
            if single_buffer_params:
                # Constant index_map: fetched once; single buffer halves the
                # resident-parameter VMEM footprint (matters most on v7x).
                return pl.BlockSpec(shape, lambda i: (0, 0),
                                    pipeline_mode=pl.Buffered(1))
            return pl.BlockSpec(shape, lambda i: (0, 0))

        return pl.pallas_call(
            _feature_attention_kernel,
            out_shape=jax.ShapeDtypeStruct((B, C), x.dtype),
            grid=grid,
            in_specs=[
                pl.BlockSpec((TB, C), lambda i: (i, 0)),   # x tile, double-buffered
                pspec((C, H)),                             # w1 resident
                pspec((1, H)),                             # b1 resident
                pspec((H, C)),                             # w2 resident
                pspec((1, C)),                             # b2 resident
            ],
            out_specs=pl.BlockSpec((TB, C), lambda i: (i, 0)),
            compiler_params=pltpu.CompilerParams(
                dimension_semantics=("parallel",),         # batch tiles -> megacore
                vmem_limit_bytes=vmem_limit,
            ),
            cost_estimate=cost,
        )(x2, w1, b1f, w2, b2f)

    try:
        out = _run(single_buffer_params=True)
    except Exception:
        # Some builds may reject pl.Buffered(1); fall back to the default
        # double-buffered parameter path (identical results, slightly more VMEM).
        out = _run(single_buffer_params=False)

    return out.reshape(orig_shape)


def feature_attention_ref(x, w1, b1, w2, b2):
    h = jnp.maximum(x @ w1 + b1, 0.0)
    gate = jax.nn.sigmoid(h @ w2 + b2)
    return x * gate


if __name__ == "__main__":
    key = jax.random.PRNGKey(0)
    batch, seq, C = 2, 8, 32          # in_channels = 32 -> hidden = 8
    H = C // 4

    kx, k1, kb1, k2, kb2 = jax.random.split(key, 5)
    x = jax.random.normal(kx, (batch, seq, C), dtype=jnp.float32)
    # PyTorch Linear(C, H).weight is (H, C); we store the transposed input-major
    # (C, H) so the kernel computes x @ w1 directly. Same for the second layer.
    w1 = jax.random.normal(k1,  (C, H), dtype=jnp.float32) * 0.1
    b1 = jax.random.normal(kb1, (H,),   dtype=jnp.float32) * 0.1
    w2 = jax.random.normal(k2,  (H, C), dtype=jnp.float32) * 0.1
    b2 = jax.random.normal(kb2, (C,),   dtype=jnp.float32) * 0.1

    # One-time parameter conversion (hoisted out of the per-call hot path).
    params = prepare_feature_attention_params(w1, b1, w2, b2)

    out = feature_attention(x, *params)
    jax.block_until_ready(out)

    ref = feature_attention_ref(x, w1, b1, w2, b2)
    # bf16 matmul operands (f32 accumulate) -> slightly looser tolerance vs f32 ref.
    assert jnp.allclose(out, ref, atol=2e-2, rtol=2e-2), "mismatch vs reference"

    print("KERNEL_OK")
</pallas_src>

<mosaic_0001>
module attributes {stable_mosaic.version = 11 : i64} {
  func.func @_feature_attention_kernel(%arg0: i32, %arg1: memref<8x32xf32, #tpu.memory_space<vmem>>, %arg2: memref<32x8xbf16, #tpu.memory_space<vmem>>, %arg3: memref<1x8xf32, #tpu.memory_space<vmem>>, %arg4: memref<8x32xbf16, #tpu.memory_space<vmem>>, %arg5: memref<1x32xf32, #tpu.memory_space<vmem>>, %arg6: memref<8x32xf32, #tpu.memory_space<vmem>>) attributes {dimension_semantics = [#tpu.dimension_semantics<parallel>], iteration_bounds = array<i64: 2>, scalar_prefetch = 0 : i64, scratch_operands = 0 : i64, tpu.core_type = #tpu.core_type<tc>, window_params = [{transform_indices = @transform_0, window_bounds = array<i64: 8, 32>}, {pipeline_mode = #tpu.pipeline_mode<synchronous>, transform_indices = @transform_1, window_bounds = array<i64: 32, 8>}, {pipeline_mode = #tpu.pipeline_mode<synchronous>, transform_indices = @transform_2, window_bounds = array<i64: 1, 8>}, {pipeline_mode = #tpu.pipeline_mode<synchronous>, transform_indices = @transform_3, window_bounds = array<i64: 8, 32>}, {pipeline_mode = #tpu.pipeline_mode<synchronous>, transform_indices = @transform_4, window_bounds = array<i64: 1, 32>}, {transform_indices = @transform_5, window_bounds = array<i64: 8, 32>}]} {
    %c0 = arith.constant 0 : index
    %c0_0 = arith.constant 0 : index
    %0 = vector.load %arg1[%c0, %c0_0] : memref<8x32xf32, #tpu.memory_space<vmem>>, vector<8x32xf32>
    %1 = arith.truncf %0 : vector<8x32xf32> to vector<8x32xbf16>
    %c0_1 = arith.constant 0 : index
    %c0_2 = arith.constant 0 : index
    %2 = vector.load %arg2[%c0_1, %c0_2] : memref<32x8xbf16, #tpu.memory_space<vmem>>, vector<32x8xbf16>
    %cst = arith.constant dense<0.000000e+00> : vector<8x8xf32>
    %3 = tpu.matmul %1, %2, %cst {dimension_numbers = #tpu.dot_dimension_numbers<[1], [0], [0], [1], [0, 0, 1, 1], [], []>} : vector<8x32xbf16>, vector<32x8xbf16>, vector<8x8xf32> -> vector<8x8xf32>
    %c0_3 = arith.constant 0 : index
    %c0_4 = arith.constant 0 : index
    %4 = vector.load %arg3[%c0_3, %c0_4] : memref<1x8xf32, #tpu.memory_space<vmem>>, vector<1x8xf32>
    %5 = vector.broadcast %4 : vector<1x8xf32> to vector<8x8xf32>
    %6 = arith.addf %3, %5 : vector<8x8xf32>
    %cst_5 = arith.constant 0.000000e+00 : f32
    %7 = vector.broadcast %cst_5 : f32 to vector<8x8xf32>
    %8 = arith.maximumf %6, %7 : vector<8x8xf32>
    %9 = arith.truncf %8 : vector<8x8xf32> to vector<8x8xbf16>
    %c0_6 = arith.constant 0 : index
    %c0_7 = arith.constant 0 : index
    %10 = vector.load %arg4[%c0_6, %c0_7] : memref<8x32xbf16, #tpu.memory_space<vmem>>, vector<8x32xbf16>
    %cst_8 = arith.constant dense<0.000000e+00> : vector<8x32xf32>
    %11 = tpu.matmul %9, %10, %cst_8 {dimension_numbers = #tpu.dot_dimension_numbers<[1], [0], [0], [1], [0, 0, 1, 1], [], []>} : vector<8x8xbf16>, vector<8x32xbf16>, vector<8x32xf32> -> vector<8x32xf32>
    %c0_9 = arith.constant 0 : index
    %c0_10 = arith.constant 0 : index
    %12 = vector.load %arg5[%c0_9, %c0_10] : memref<1x32xf32, #tpu.memory_space<vmem>>, vector<1x32xf32>
    %13 = vector.broadcast %12 : vector<1x32xf32> to vector<8x32xf32>
    %14 = arith.addf %11, %13 : vector<8x32xf32>
    %15 = arith.negf %14 : vector<8x32xf32>
    %16 = math.exp %15 : vector<8x32xf32>
    %cst_11 = arith.constant 1.000000e+00 : f32
    %17 = vector.broadcast %cst_11 : f32 to vector<8x32xf32>
    %18 = arith.addf %17, %16 : vector<8x32xf32>
    %19 = arith.divf %17, %18 : vector<8x32xf32>
    %c0_12 = arith.constant 0 : index
    %c0_13 = arith.constant 0 : index
    %20 = vector.load %arg1[%c0_12, %c0_13] : memref<8x32xf32, #tpu.memory_space<vmem>>, vector<8x32xf32>
    %21 = arith.mulf %20, %19 : vector<8x32xf32>
    %c0_14 = arith.constant 0 : index
    %c0_15 = arith.constant 0 : index
    %22 = vector.load %arg6[%c0_14, %c0_15] : memref<8x32xf32, #tpu.memory_space<vmem>>, vector<8x32xf32>
    tpu.vector_store %arg6[%c0_14, %c0_15], %21 {strides = array<i32>} : memref<8x32xf32, #tpu.memory_space<vmem>>, vector<8x32xf32>,
    return
  }
  func.func @transform_0(%arg0: i32) -> (i32, i32) {
    %c0_i32 = arith.constant 0 : i32
    %c0_i32_0 = arith.constant 0 : i32
    return %arg0, %c0_i32 : i32, i32
  }
  func.func @transform_1(%arg0: i32) -> (i32, i32) {
    %c0_i32 = arith.constant 0 : i32
    %c0_i32_0 = arith.constant 0 : i32
    %c0_i32_1 = arith.constant 0 : i32
    return %c0_i32, %c0_i32_0 : i32, i32
  }
  func.func @transform_2(%arg0: i32) -> (i32, i32) {
    %c0_i32 = arith.constant 0 : i32
    %c0_i32_0 = arith.constant 0 : i32
    %c0_i32_1 = arith.constant 0 : i32
    return %c0_i32, %c0_i32_0 : i32, i32
  }
  func.func @transform_3(%arg0: i32) -> (i32, i32) {
    %c0_i32 = arith.constant 0 : i32
    %c0_i32_0 = arith.constant 0 : i32
    %c0_i32_1 = arith.constant 0 : i32
    return %c0_i32, %c0_i32_0 : i32, i32
  }
  func.func @transform_4(%arg0: i32) -> (i32, i32) {
    %c0_i32 = arith.constant 0 : i32
    %c0_i32_0 = arith.constant 0 : i32
    %c0_i32_1 = arith.constant 0 : i32
    return %c0_i32, %c0_i32_0 : i32, i32
  }
  func.func @transform_5(%arg0: i32) -> (i32, i32) {
    %c0_i32 = arith.constant 0 : i32
    %c0_i32_0 = arith.constant 0 : i32
    return %arg0, %c0_i32 : i32, i32
  }
}

module attributes {stable_mosaic.version = 11 : i64} {
  func.func @_feature_attention_kernel(%arg0: i32, %arg1: memref<8x32xf32, #tpu.memory_space<vmem>>, %arg2: memref<32x8xbf16, #tpu.memory_space<vmem>>, %arg3: memref<1x8xf32, #tpu.memory_space<vmem>>, %arg4: memref<8x32xbf16, #tpu.memory_space<vmem>>, %arg5: memref<1x32xf32, #tpu.memory_space<vmem>>, %arg6: memref<8x32xf32, #tpu.memory_space<vmem>>) attributes {dimension_semantics = [#tpu.dimension_semantics<parallel>], iteration_bounds = array<i64: 2>, scalar_prefetch = 0 : i64, scratch_operands = 0 : i64, tpu.core_type = #tpu.core_type<tc>, window_params = [{transform_indices = @transform_0, window_bounds = array<i64: 8, 32>}, {pipeline_mode = #tpu.pipeline_mode<synchronous>, transform_indices = @transform_1, window_bounds = array<i64: 32, 8>}, {pipeline_mode = #tpu.pipeline_mode<synchronous>, transform_indices = @transform_2, window_bounds = array<i64: 1, 8>}, {pipeline_mode = #tpu.pipeline_mode<synchronous>, transform_indices = @transform_3, window_bounds = array<i64: 8, 32>}, {pipeline_mode = #tpu.pipeline_mode<synchronous>, transform_indices = @transform_4, window_bounds = array<i64: 1, 32>}, {transform_indices = @transform_5, window_bounds = array<i64: 8, 32>}]} {
    %c0 = arith.constant 0 : index
    %c0_0 = arith.constant 0 : index
    %0 = vector.load %arg1[%c0, %c0_0] : memref<8x32xf32, #tpu.memory_space<vmem>>, vector<8x32xf32>
    %1 = arith.truncf %0 : vector<8x32xf32> to vector<8x32xbf16>
    %c0_1 = arith.constant 0 : index
    %c0_2 = arith.constant 0 : index
    %2 = vector.load %arg2[%c0_1, %c0_2] : memref<32x8xbf16, #tpu.memory_space<vmem>>, vector<32x8xbf16>
    %cst = arith.constant dense<0.000000e+00> : vector<8x8xf32>
    %3 = tpu.matmul %1, %2, %cst {dimension_numbers = #tpu.dot_dimension_numbers<[1], [0], [0], [1], [0, 0, 1, 1], [], []>} : vector<8x32xbf16>, vector<32x8xbf16>, vector<8x8xf32> -> vector<8x8xf32>
    %c0_3 = arith.constant 0 : index
    %c0_4 = arith.constant 0 : index
    %4 = vector.load %arg3[%c0_3, %c0_4] : memref<1x8xf32, #tpu.memory_space<vmem>>, vector<1x8xf32>
    %5 = vector.broadcast %4 : vector<1x8xf32> to vector<8x8xf32>
    %6 = arith.addf %3, %5 : vector<8x8xf32>
    %cst_5 = arith.constant 0.000000e+00 : f32
    %7 = vector.broadcast %cst_5 : f32 to vector<8x8xf32>
    %8 = arith.maximumf %6, %7 : vector<8x8xf32>
    %9 = arith.truncf %8 : vector<8x8xf32> to vector<8x8xbf16>
    %c0_6 = arith.constant 0 : index
    %c0_7 = arith.constant 0 : index
    %10 = vector.load %arg4[%c0_6, %c0_7] : memref<8x32xbf16, #tpu.memory_space<vmem>>, vector<8x32xbf16>
    %cst_8 = arith.constant dense<0.000000e+00> : vector<8x32xf32>
    %11 = tpu.matmul %9, %10, %cst_8 {dimension_numbers = #tpu.dot_dimension_numbers<[1], [0], [0], [1], [0, 0, 1, 1], [], []>} : vector<8x8xbf16>, vector<8x32xbf16>, vector<8x32xf32> -> vector<8x32xf32>
    %c0_9 = arith.constant 0 : index
    %c0_10 = arith.constant 0 : index
    %12 = vector.load %arg5[%c0_9, %c0_10] : memref<1x32xf32, #tpu.memory_space<vmem>>, vector<1x32xf32>
    %13 = vector.broadcast %12 : vector<1x32xf32> to vector<8x32xf32>
    %14 = arith.addf %11, %13 : vector<8x32xf32>
    %15 = arith.negf %14 : vector<8x32xf32>
    %16 = math.exp %15 : vector<8x32xf32>
    %cst_11 = arith.constant 1.000000e+00 : f32
    %17 = vector.broadcast %cst_11 : f32 to vector<8x32xf32>
    %18 = arith.addf %17, %16 : vector<8x32xf32>
    %19 = arith.divf %17, %18 : vector<8x32xf32>
    %c0_12 = arith.constant 0 : index
    %c0_13 = arith.constant 0 : index
    %20 = vector.load %arg1[%c0_12, %c0_13] : memref<8x32xf32, #tpu.memory_space<vmem>>, vector<8x32xf32>
    %21 = arith.mulf %20, %19 : vector<8x32xf32>
    %c0_14 = arith.constant 0 : index
    %c0_15 = arith.constant 0 : index
    %22 = vector.load %arg6[%c0_14, %c0_15] : memref<8x32xf32, #tpu.memory_space<vmem>>, vector<8x32xf32>
    tpu.vector_store %arg6[%c0_14, %c0_15], %21 {strides = array<i32>} : memref<8x32xf32, #tpu.memory_space<vmem>>, vector<8x32xf32>,
    return
  }
  func.func @transform_0(%arg0: i32) -> (i32, i32) {
    %c0_i32 = arith.constant 0 : i32
    %c0_i32_0 = arith.constant 0 : i32
    return %arg0, %c0_i32 : i32, i32
  }
  func.func @transform_1(%arg0: i32) -> (i32, i32) {
    %c0_i32 = arith.constant 0 : i32
    %c0_i32_0 = arith.constant 0 : i32
    %c0_i32_1 = arith.constant 0 : i32
    return %c0_i32, %c0_i32_0 : i32, i32
  }
  func.func @transform_2(%arg0: i32) -> (i32, i32) {
    %c0_i32 = arith.constant 0 : i32
    %c0_i32_0 = arith.constant 0 : i32
    %c0_i32_1 = arith.constant 0 : i32
    return %c0_i32, %c0_i32_0 : i32, i32
  }
  func.func @transform_3(%arg0: i32) -> (i32, i32) {
    %c0_i32 = arith.constant 0 : i32
    %c0_i32_0 = arith.constant 0 : i32
    %c0_i32_1 = arith.constant 0 : i32
    return %c0_i32, %c0_i32_0 : i32, i32
  }
  func.func @transform_4(%arg0: i32) -> (i32, i32) {
    %c0_i32 = arith.constant 0 : i32
    %c0_i32_0 = arith.constant 0 : i32
    %c0_i32_1 = arith.constant 0 : i32
    return %c0_i32, %c0_i32_0 : i32, i32
  }
  func.func @transform_5(%arg0: i32) -> (i32, i32) {
    %c0_i32 = arith.constant 0 : i32
    %c0_i32_0 = arith.constant 0 : i32
    return %arg0, %c0_i32 : i32, i32
  }
}

</mosaic_0001>

<llo_original>
// kernel: tpu_custom_call.1
$region0: #{tpu_custom_call.1}
  #allocation0 [shape = 'u32[]', space=smem, size = 0x4, offset = 0x4, fixed_abs, tag = 'smem constant byte address 0x4 - core index']
  #allocation1 [shape = 'u32[144,128]{1,0:T(1,128)}', space=vmem, size = 0x12000, scoped, tag = 'internal scratch']
  %s0 = inlined_call_operand.vmem [shape: f32[16,32], index: 0, kind: input, shape index: {}]
  %s1 = inlined_call_operand.vmem [shape: bf16[32,8], index: 1, kind: input, shape index: {}]
  %s2 = inlined_call_operand.vmem [shape: f32[1,8], index: 2, kind: input, shape index: {}]
  %s3 = inlined_call_operand.vmem [shape: bf16[8,32], index: 3, kind: input, shape index: {}]
  %s4 = inlined_call_operand.vmem [shape: f32[1,32], index: 4, kind: input, shape index: {}]
  %s5 = inlined_call_operand.hbm [shape: f32[16,32], index: 5, kind: output, shape index: {}]
  %s6 = sld [smem:[#allocation0]]
  $region53: #{tpu_custom_call.1} parent=0
    _
  %s8 = ssub.s32 1, %s6
  %s9 = scalar_select 0, %s8, %s6
  $region1: #{tpu_custom_call.1} parent=0
    #allocation2 [shape = 'u8[8192]{0}', space=vmem, size = 0x2000, scoped, tag = 'output window, operand 0']
    #allocation3 [shape = 's32[2]{0}', space=sflag, size = 0x8, scoped, tag = 'scoped memory for tpu_custom_call.1']
    %10 = vsyncpa [#allocation3], 0
    %s11 = scalar_lea.sflag [#allocation3], 1
    %12 = vsyncpa %s11, 0
    loop: start=0, step=1, limit=4
    $region2: #{tpu_custom_call.1} parent=1 // loop_pre_header
      _
    $region3: #{tpu_custom_call.1} parent=1 // loop_header
      %s14 = sphi 0, %s18
      %p15 = scmp.ge.s32.totalorder %s14, 4
      %s24 = sphi 0, %s26
      %s27 = sphi 0, %s24
      %s28 = sphi 0, %s27
      %s44 = sphi 0, %s28
      %s48 = sphi 0, %s48
      %s50 = sphi 0, %s48
      %s51 = sphi 0, %s50
      %s65 = sphi 0, %s51
      %s69 = sphi 0, %s69
      %s71 = sphi 0, %s69
      %s72 = sphi 0, %s71
      %s86 = sphi 0, %s72
      %s90 = sphi 0, %s90
      %s92 = sphi 0, %s90
      %s93 = sphi 0, %s92
      %s107 = sphi 0, %s93
      %s111 = sphi 0, %s111
      %s113 = sphi 0, %s111
      %s114 = sphi 0, %s113
      %s128 = sphi 0, %s114
      %s134 = sphi 0, %s136
      %s137 = sphi 0, %s134
      %s138 = sphi 0, %s137
      %s154 = sphi 0, %s138
    $region4: #{tpu_custom_call.1} parent=1 // loop_header_branch
      %17 = sbr.rel (%p15) target = $region8
    $region5: #{tpu_custom_call.1} parent=1 // loop_body
      %s19 = ssub.s32 %s14, 1
      %s20 = ssub.s32 %s14, 2
      %s21 = sadd.s32 %s14, 1
      %s22 = ssub.s32 %s14, %s21
      %p23 = scmp.eq.s32.totalorder %s22, 0
      %s25 = sadd.s32 %s24, 1
      %s26 = scalar_select %p23, %s24, %s25
      %p29 = pneg %p23
      %p30 = scmp.eq.s32.totalorder %s14, 1
      %p31 = por %p29, %p30
      %p32 = scmp.ne.s32.totalorder %s24, %s27
      %p33 = scmp.eq.s32.totalorder %s14, 0
      %p34 = por %p32, %p33
      %p35 = scmp.ne.s32.totalorder %s24, %s27
      %p36 = scmp.eq.s32.totalorder %s19, 1
      %p37 = por %p35, %p36
      %p38 = scmp.ne.s32.totalorder %s27, %s28
      %p39 = scmp.eq.s32.totalorder %s19, 0
      %p40 = por %p38, %p39
      %p41 = scmp.ne.s32.totalorder %s27, %s28
      %p42 = scmp.eq.s32.totalorder %s20, 1
      %p43 = por %p41, %p42
      %p45 = scmp.ne.s32.totalorder %s28, %s44
      %p46 = scmp.eq.s32.totalorder %s20, 0
      %p47 = por %p45, %p46
      %s49 = sadd.s32 %s48, 1
      %p52 = scmp.eq.s32.totalorder %s14, 1
      %p53 = scmp.ne.s32.totalorder %s48, %s50
      %p54 = scmp.eq.s32.totalorder %s14, 0
      %p55 = por %p53, %p54
      %p56 = scmp.ne.s32.totalorder %s48, %s50
      %p57 = scmp.eq.s32.totalorder %s19, 1
      %p58 = por %p56, %p57
      %p59 = scmp.ne.s32.totalorder %s50, %s51
      %p60 = scmp.eq.s32.totalorder %s19, 0
      %p61 = por %p59, %p60
      %p62 = scmp.ne.s32.totalorder %s50, %s51
      %p63 = scmp.eq.s32.totalorder %s20, 1
      %p64 = por %p62, %p63
      %p66 = scmp.ne.s32.totalorder %s51, %s65
      %p67 = scmp.eq.s32.totalorder %s20, 0
      %p68 = por %p66, %p67
      %s70 = sadd.s32 %s69, 1
      %p73 = scmp.eq.s32.totalorder %s14, 1
      %p74 = scmp.ne.s32.totalorder %s69, %s71
      %p75 = scmp.eq.s32.totalorder %s14, 0
      %p76 = por %p74, %p75
      %p77 = scmp.ne.s32.totalorder %s69, %s71
      %p78 = scmp.eq.s32.totalorder %s19, 1
      %p79 = por %p77, %p78
      %p80 = scmp.ne.s32.totalorder %s71, %s72
      %p81 = scmp.eq.s32.totalorder %s19, 0
      %p82 = por %p80, %p81
      %p83 = scmp.ne.s32.totalorder %s71, %s72
      %p84 = scmp.eq.s32.totalorder %s20, 1
      %p85 = por %p83, %p84
      %p87 = scmp.ne.s32.totalorder %s72, %s86
      %p88 = scmp.eq.s32.totalorder %s20, 0
      %p89 = por %p87, %p88
      %s91 = sadd.s32 %s90, 1
      %p94 = scmp.eq.s32.totalorder %s14, 1
      %p95 = scmp.ne.s32.totalorder %s90, %s92
      %p96 = scmp.eq.s32.totalorder %s14, 0
      %p97 = por %p95, %p96
      %p98 = scmp.ne.s32.totalorder %s90, %s92
      %p99 = scmp.eq.s32.totalorder %s19, 1
      %p100 = por %p98, %p99
      %p101 = scmp.ne.s32.totalorder %s92, %s93
      %p102 = scmp.eq.s32.totalorder %s19, 0
      %p103 = por %p101, %p102
      %p104 = scmp.ne.s32.totalorder %s92, %s93
      %p105 = scmp.eq.s32.totalorder %s20, 1
      %p106 = por %p104, %p105
      %p108 = scmp.ne.s32.totalorder %s93, %s107
      %p109 = scmp.eq.s32.totalorder %s20, 0
      %p110 = por %p108, %p109
      %s112 = sadd.s32 %s111, 1
      %p115 = scmp.eq.s32.totalorder %s14, 1
      %p116 = scmp.ne.s32.totalorder %s111, %s113
      %p117 = scmp.eq.s32.totalorder %s14, 0
      %p118 = por %p116, %p117
      %p119 = scmp.ne.s32.totalorder %s111, %s113
      %p120 = scmp.eq.s32.totalorder %s19, 1
      %p121 = por %p119, %p120
      %p122 = scmp.ne.s32.totalorder %s113, %s114
      %p123 = scmp.eq.s32.totalorder %s19, 0
      %p124 = por %p122, %p123
      %p125 = scmp.ne.s32.totalorder %s113, %s114
      %p126 = scmp.eq.s32.totalorder %s20, 1
      %p127 = por %p125, %p126
      %p129 = scmp.ne.s32.totalorder %s114, %s128
      %p130 = scmp.eq.s32.totalorder %s20, 0
      %p131 = por %p129, %p130
      %s132 = ssub.s32 %s14, %s21
      %p133 = scmp.eq.s32.totalorder %s132, 0
      %s135 = sadd.s32 %s134, 1
      %s136 = scalar_select %p133, %s134, %s135
      %p139 = pneg %p133
      %p140 = scmp.eq.s32.totalorder %s14, 1
      %p141 = por %p139, %p140
      %p142 = scmp.ne.s32.totalorder %s134, %s137
      %p143 = scmp.eq.s32.totalorder %s14, 0
      %p144 = por %p142, %p143
      %p145 = scmp.ne.s32.totalorder %s134, %s137
      %p146 = scmp.eq.s32.totalorder %s19, 1
      %p147 = por %p145, %p146
      %p148 = scmp.ne.s32.totalorder %s137, %s138
      %p149 = scmp.eq.s32.totalorder %s19, 0
      %p150 = por %p148, %p149
      %p151 = scmp.ne.s32.totalorder %s137, %s138
      %p152 = scmp.eq.s32.totalorder %s20, 1
      %p153 = por %p151, %p152
      %p155 = scmp.ne.s32.totalorder %s138, %s154
      %p156 = scmp.eq.s32.totalorder %s20, 0
      %p157 = por %p155, %p156
      %p158 = scmp.le.s32.totalorder 1, %s14
      %p159 = scmp.lt.s32.totalorder %s14, 3
      %p160 = pnand %p158, %p159
      %p161 = pneg %p160
      // Predicated region
      $region9: #{tpu_custom_call.1} parent=5 // pred_check
        _
      $region10: #{tpu_custom_call.1} parent=5 // pred_check_branch
        %163 = sbr.rel (%p160) target = $region12
      $region11: #{tpu_custom_call.1} parent=5 // pred_region
        %s164 = ssub.s32 %s14, 1
        // Predicated region
        $region13: #{tpu_custom_call.1} parent=11 // pred_check
          %p165 = pneg %p61
        $region14: #{tpu_custom_call.1} parent=11 // pred_check_branch
          %167 = sbr.rel (%p165) target = $region16
        $region15: #{tpu_custom_call.1} parent=11 // pred_region
          _
        $region16: #{tpu_custom_call.1} parent=11 // pred_fallthru
          _
        // Predicated region
        $region17: #{tpu_custom_call.1} parent=11 // pred_check
          %p168 = pneg %p82
        $region18: #{tpu_custom_call.1} parent=11 // pred_check_branch
          %170 = sbr.rel (%p168) target = $region20
        $region19: #{tpu_custom_call.1} parent=11 // pred_region
          _
        $region20: #{tpu_custom_call.1} parent=11 // pred_fallthru
          _
        // Predicated region
        $region21: #{tpu_custom_call.1} parent=11 // pred_check
          %p171 = pneg %p103
        $region22: #{tpu_custom_call.1} parent=11 // pred_check_branch
          %173 = sbr.rel (%p171) target = $region24
        $region23: #{tpu_custom_call.1} parent=11 // pred_region
          _
        $region24: #{tpu_custom_call.1} parent=11 // pred_fallthru
          _
        // Predicated region
        $region25: #{tpu_custom_call.1} parent=11 // pred_check
          %p174 = pneg %p124
        $region26: #{tpu_custom_call.1} parent=11 // pred_check_branch
          %176 = sbr.rel (%p174) target = $region28
        $region27: #{tpu_custom_call.1} parent=11 // pred_region
          _
        $region28: #{tpu_custom_call.1} parent=11 // pred_fallthru
          _
      $region12: #{tpu_custom_call.1} parent=5 // pred_fallthru
        _
      %p177 = scmp.lt.s32.totalorder %s14, 2
      // Predicated region
      $region29: #{tpu_custom_call.1} parent=5 // pred_check
        %p178 = pneg %p177
      $region30: #{tpu_custom_call.1} parent=5 // pred_check_branch
        %180 = sbr.rel (%p178) target = $region32
      $region31: #{tpu_custom_call.1} parent=5 // pred_region
        // Predicated region
        $region33: #{tpu_custom_call.1} parent=31 // pred_check
          %p181 = pneg %p34
        $region34: #{tpu_custom_call.1} parent=31 // pred_check_branch
          %183 = sbr.rel (%p181) target = $region36
        $region35: #{tpu_custom_call.1} parent=31 // pred_region
          %p184 = scmp.lt.s32.totalorder %s14, 1
          %s185 = scalar_select %p184, %s14, 1
          %s186 = smul.addr %s185, 8
          %s187 = scalar_lea.vmem %s0, %s186
        $region36: #{tpu_custom_call.1} parent=31 // pred_fallthru
          _
      $region32: #{tpu_custom_call.1} parent=5 // pred_fallthru
        _
      %p188 = scmp.le.s32.totalorder 1, %s14
      %p189 = scmp.lt.s32.totalorder %s14, 3
      %p190 = pnand %p188, %p189
      %p191 = pneg %p190
      // Predicated region
      $region37: #{tpu_custom_call.1} parent=5 // pred_check
        _
      $region38: #{tpu_custom_call.1} parent=5 // pred_check_branch
        %193 = sbr.rel (%p190) target = $region40
      $region39: #{tpu_custom_call.1} parent=5 // pred_region
        %s194 = ssub.s32 %s14, 1
        %p195 = scmp.lt.s32.totalorder %s19, 1
        %s196 = scalar_select %p195, %s19, 1
        %s197 = smul.addr %s196, 8
        %s198 = scalar_lea.vmem %s0, %s197
        %p199 = pneg %p40
        %p200 = pneg %p37
        %p201 = pneg %p61
        %p202 = pneg %p58
        %p203 = pneg %p82
        %p204 = pneg %p79
        %p205 = pneg %p103
        %p206 = pneg %p100
        %p207 = pneg %p124
        %p208 = pneg %p121
        %p209 = pneg %p150
        %p210 = pneg %p147
        %s211 = sand.u32 %s137, 1
        %s212 = scalar_lea.sflag [#allocation3], %s211
        %s213 = sand.u32 %s137, 1
        %s214 = smul.addr %s213, 8
        %s215 = scalar_lea.vmem [#allocation2], %s214
        %p216 = scmp.lt.s32.totalorder %s19, 1
        %s217 = scalar_select %p216, %s19, 1
        %s218 = smul.addr %s217, 8
        %s219 = scalar_lea.vmem %s0, %s218
        %v221 = vld [vmem:[%s219] sm:$0xff]
        %v222 = vpack.c.bf16 %v221, %v221
        %v223 = vld [vmem:[%s1] sm:$0xf]
        %v224 = vld [vmem:[%s1 + $0x4] sm:$0xf]
        %v225 = vld [vmem:[%s1 + $0x8] sm:$0xf]
        %v226 = vld [vmem:[%s1 + $0xc] sm:$0xf]
        %v227 = vld [vmem:[%s2] sm:$0x1]
        %v229 = vlaneseq
        %v230 = vshrl.u32 %v229, 7
        %v231 = vsub.s32 0, %v230
        %v232 = vrot.slane %v227, %v231
        %v238 = vunpack.c.l.b16 %v223
        %v239 = vunpack.c.l.b16 %v224
        %v240 = vunpack.c.l.b16 %v225
        %v241 = vunpack.c.l.b16 %v226
        %v242 = vpack.c.b16 %v239, %v238
        %v243 = vpack.c.b16 %v241, %v240
        %vm246 = vcmask 261120
        %v248 = vsel %vm246, %v222, 0
        %250 = vmatprep.subr.bf16.mxu0 0
        %251 = vmatpush1.bf16.msra.mxu0 %v242
        %252 = vmatprep.subr.bf16.mxu0 0
        %253 = vmatpush1.bf16.msra.mxu0 %v243
        %254 = vmatprep.subr.bf16.mxu0 0
        %255 = vmatpush1.bf16.msra.mxu0 0
        %256 = vmatprep.subr.bf16.mxu0 0
        %257 = vmatpush1.bf16.msra.mxu0 0
        %258 = vmatprep.subr.bf16.mxu0 0
        %259 = vmatpush1.bf16.msra.mxu0 0
        %260 = vmatprep.subr.bf16.mxu0 0
        %261 = vmatpush1.bf16.msra.mxu0 0
        %262 = vmatprep.subr.bf16.mxu0 0
        %263 = vmatpush1.bf16.msra.mxu0 0
        %264 = vmatprep.subr.bf16.mxu0 0
        %265 = vmatpush1.bf16.msra.mxu0 0
        %266 = vmatprep.subr.bf16.mxu0 0
        %267 = vmatpush1.bf16.msra.mxu0 0
        %268 = vmatprep.subr.bf16.mxu0 0
        %269 = vmatpush1.bf16.msra.mxu0 0
        %270 = vmatprep.subr.bf16.mxu0 0
        %271 = vmatpush1.bf16.msra.mxu0 0
        %272 = vmatprep.subr.bf16.mxu0 0
        %273 = vmatpush1.bf16.msra.mxu0 0
        %274 = vmatprep.subr.bf16.mxu0 0
        %275 = vmatpush1.bf16.msra.mxu0 0
        %276 = vmatprep.subr.bf16.mxu0 0
        %277 = vmatpush1.bf16.msra.mxu0 0
        %278 = vmatprep.subr.bf16.mxu0 0
        %279 = vmatpush1.bf16.msra.mxu0 0
        %280 = vmatprep.subr.bf16.mxu0 0
        %281 = vmatpush1.bf16.msra.mxu0 0
        %282 = vmatprep.mubr.bf16.mxu0 0
        %283 = vmatmul.mubr.bf16.gmra.mrb[0].mxu0 %v248
        %v284 = vpop.f32.mrb[0].mxu0
        %v285 = vadd.f32 %v232, %v284
        %v286 = vpop.f32.mrb[0].mxu0
        %v287 = vpop.f32.mrb[0].mxu0
        %v288 = vpop.f32.mrb[0].mxu0
        %289 = vdwg.mxu0
        %v290 = vmax.f32 %v285, 0.0
        %v291 = vpack.c.bf16 %v290, %v290
        %v292 = vld [vmem:[%s3] sm:$0xf]
        %v293 = vld [vmem:[%s4] sm:$0x1]
        %v295 = vlaneseq
        %v296 = vshrl.u32 %v295, 7
        %v297 = vsub.s32 0, %v296
        %v298 = vrot.slane %v293, %v297
        %vm300 = vcmask 64512
        %v302 = vsel %vm300, %v291, 0
        %vm304 = vcmask 1043456
        %v306 = vsel %vm304, %v292, 0
        %308 = vmatprep.subr.bf16.mxu0 0
        %309 = vmatpush1.bf16.msra.mxu0 %v306
        %310 = vmatprep.subr.bf16.mxu0 0
        %311 = vmatpush1.bf16.msra.mxu0 0
        %312 = vmatprep.subr.bf16.mxu0 0
        %313 = vmatpush1.bf16.msra.mxu0 0
        %314 = vmatprep.subr.bf16.mxu0 0
        %315 = vmatpush1.bf16.msra.mxu0 0
        %316 = vmatprep.subr.bf16.mxu0 0
        %317 = vmatpush1.bf16.msra.mxu0 0
        %318 = vmatprep.subr.bf16.mxu0 0
        %319 = vmatpush1.bf16.msra.mxu0 0
        %320 = vmatprep.subr.bf16.mxu0 0
        %321 = vmatpush1.bf16.msra.mxu0 0
        %322 = vmatprep.subr.bf16.mxu0 0
        %323 = vmatpush1.bf16.msra.mxu0 0
        %324 = vmatprep.subr.bf16.mxu0 0
        %325 = vmatpush1.bf16.msra.mxu0 0
        %326 = vmatprep.subr.bf16.mxu0 0
        %327 = vmatpush1.bf16.msra.mxu0 0
        %328 = vmatprep.subr.bf16.mxu0 0
        %329 = vmatpush1.bf16.msra.mxu0 0
        %330 = vmatprep.subr.bf16.mxu0 0
        %331 = vmatpush1.bf16.msra.mxu0 0
        %332 = vmatprep.subr.bf16.mxu0 0
        %333 = vmatpush1.bf16.msra.mxu0 0
        %334 = vmatprep.subr.bf16.mxu0 0
        %335 = vmatpush1.bf16.msra.mxu0 0
        %336 = vmatprep.subr.bf16.mxu0 0
        %337 = vmatpush1.bf16.msra.mxu0 0
        %338 = vmatprep.subr.bf16.mxu0 0
        %339 = vmatpush1.bf16.msra.mxu0 0
        %340 = vmatprep.mubr.bf16.mxu0 0
        %341 = vmatmul.mubr.bf16.gmra.mrb[0].mxu0 %v302
        %v342 = vpop.f32.mrb[0].mxu0
        %v343 = vadd.f32 %v298, %v342
        %v344 = vpop.f32.mrb[0].mxu0
        %v345 = vpop.f32.mrb[0].mxu0
        %v346 = vpop.f32.mrb[0].mxu0
        %347 = vdwg.mxu0
        %v348 = vxor.u32 %v343, 2147483648
        %v349 = vmul.f32 %v348, 1.442695
        %v350 = vpow.pop %v349
        %v351 = vadd.f32 %v350, 1.0
        %v352 = vrcp.pop %v351
        %v353 = vmul.f32 1.0, %v352
        %v354 = vmul.f32 %v221, %v353
        %355 = vst.msk [vmem:[%s215] sm:$0xff] %vm246, %v354
        %s356 = sand.u32 %s137, 1
        %s357 = scalar_lea.sflag [#allocation3], %s356
        %s358 = sand.u32 %s137, 1
        %s359 = smul.addr %s358, 8
        %s360 = scalar_lea.vmem [#allocation2], %s359
        // Predicated region
        $region41: #{tpu_custom_call.1} parent=39 // pred_check
          %p361 = pneg %p147
        $region42: #{tpu_custom_call.1} parent=39 // pred_check_branch
          %363 = sbr.rel (%p361) target = $region44
        $region43: #{tpu_custom_call.1} parent=39 // pred_region
          %s365 = ssub.s32 128, 128
          %366 = vsyncadd %s357, %s365
          %s367 = smul.addr %s19, 128
          %s368 = scalar_lea.hbm %s5, %s367
          %s370 = sshll.u32 %s360, 4
          %s371 = int_to_ptr.vmem [resolvable:$true] %s370
          %373 = dma.vmem_to_hbm [thread:$0]  %s371, 128, %s368, %s357
        $region44: #{tpu_custom_call.1} parent=39 // pred_fallthru
          _
      $region40: #{tpu_custom_call.1} parent=5 // pred_fallthru
        _
      %p374 = scmp.le.s32.totalorder 2, %s14
      // Predicated region
      $region45: #{tpu_custom_call.1} parent=5 // pred_check
        %p375 = pneg %p374
      $region46: #{tpu_custom_call.1} parent=5 // pred_check_branch
        %377 = sbr.rel (%p375) target = $region48
      $region47: #{tpu_custom_call.1} parent=5 // pred_region
        %s378 = ssub.s32 %s14, 2
        // Predicated region
        $region49: #{tpu_custom_call.1} parent=47 // pred_check
          %p379 = pneg %p153
        $region50: #{tpu_custom_call.1} parent=47 // pred_check_branch
          %381 = sbr.rel (%p379) target = $region52
        $region51: #{tpu_custom_call.1} parent=47 // pred_region
          %s382 = sand.u32 %s138, 1
          %s383 = scalar_lea.sflag [#allocation3], %s382
          %s384 = sand.u32 %s138, 1
          %s385 = smul.addr %s384, 8
          %s386 = scalar_lea.vmem [#allocation2], %s385
          %387 = dma.done %s383, 128
        $region52: #{tpu_custom_call.1} parent=47 // pred_fallthru
          _
      $region48: #{tpu_custom_call.1} parent=5 // pred_fallthru
        _
    $region6: #{tpu_custom_call.1} parent=1 // loop_footer
      %s18 = sadd.s32 1, %s14
    $region7: #{tpu_custom_call.1} parent=1 // loop_footer_branch
      %13 = sbr.rel target = $region3
    $region8: #{tpu_custom_call.1} parent=1 // loop_exit
      _
    %388 = vsyncpa [#allocation3], 1
    %s389 = scalar_lea.sflag [#allocation3], 1
    %390 = vsyncpa %s389, 1

// kernel: tpu_custom_call.1
$region0: #{tpu_custom_call.1}
  #allocation0 [shape = 'u32[]', space=smem, size = 0x4, offset = 0x4, fixed_abs, tag = 'smem constant byte address 0x4 - core index']
  #allocation1 [shape = 'u32[144,128]{1,0:T(1,128)}', space=vmem, size = 0x12000, scoped, tag = 'internal scratch']
  %s0 = inlined_call_operand.vmem [shape: f32[16,32], index: 0, kind: input, shape index: {}]
  %s1 = inlined_call_operand.vmem [shape: bf16[32,8], index: 1, kind: input, shape index: {}]
  %s2 = inlined_call_operand.vmem [shape: f32[1,8], index: 2, kind: input, shape index: {}]
  %s3 = inlined_call_operand.vmem [shape: bf16[8,32], index: 3, kind: input, shape index: {}]
  %s4 = inlined_call_operand.vmem [shape: f32[1,32], index: 4, kind: input, shape index: {}]
  %s5 = inlined_call_operand.hbm [shape: f32[16,32], index: 5, kind: output, shape index: {}]
  %s6 = sld [smem:[#allocation0]]
  $region53: #{tpu_custom_call.1} parent=0
    _
  %s8 = ssub.s32 1, %s6
  %s9 = scalar_select 0, %s8, %s6
  $region1: #{tpu_custom_call.1} parent=0
    #allocation2 [shape = 'u8[8192]{0}', space=vmem, size = 0x2000, scoped, tag = 'output window, operand 0']
    #allocation3 [shape = 's32[2]{0}', space=sflag, size = 0x8, scoped, tag = 'scoped memory for tpu_custom_call.1']
    %10 = vsyncpa [#allocation3], 0
    %s11 = scalar_lea.sflag [#allocation3], 1
    %12 = vsyncpa %s11, 0
    loop: start=0, step=1, limit=4
    $region2: #{tpu_custom_call.1} parent=1 // loop_pre_header
      _
    $region3: #{tpu_custom_call.1} parent=1 // loop_header
      %s14 = sphi 0, %s18
      %p15 = scmp.ge.s32.totalorder %s14, 4
      %s24 = sphi 0, %s26
      %s27 = sphi 0, %s24
      %s28 = sphi 0, %s27
      %s44 = sphi 0, %s28
      %s48 = sphi 0, %s48
      %s50 = sphi 0, %s48
      %s51 = sphi 0, %s50
      %s65 = sphi 0, %s51
      %s69 = sphi 0, %s69
      %s71 = sphi 0, %s69
      %s72 = sphi 0, %s71
      %s86 = sphi 0, %s72
      %s90 = sphi 0, %s90
      %s92 = sphi 0, %s90
      %s93 = sphi 0, %s92
      %s107 = sphi 0, %s93
      %s111 = sphi 0, %s111
      %s113 = sphi 0, %s111
      %s114 = sphi 0, %s113
      %s128 = sphi 0, %s114
      %s134 = sphi 0, %s136
      %s137 = sphi 0, %s134
      %s138 = sphi 0, %s137
      %s154 = sphi 0, %s138
    $region4: #{tpu_custom_call.1} parent=1 // loop_header_branch
      %17 = sbr.rel (%p15) target = $region8
    $region5: #{tpu_custom_call.1} parent=1 // loop_body
      %s19 = ssub.s32 %s14, 1
      %s20 = ssub.s32 %s14, 2
      %s21 = sadd.s32 %s14, 1
      %s22 = ssub.s32 %s14, %s21
      %p23 = scmp.eq.s32.totalorder %s22, 0
      %s25 = sadd.s32 %s24, 1
      %s26 = scalar_select %p23, %s24, %s25
      %p29 = pneg %p23
      %p30 = scmp.eq.s32.totalorder %s14, 1
      %p31 = por %p29, %p30
      %p32 = scmp.ne.s32.totalorder %s24, %s27
      %p33 = scmp.eq.s32.totalorder %s14, 0
      %p34 = por %p32, %p33
      %p35 = scmp.ne.s32.totalorder %s24, %s27
      %p36 = scmp.eq.s32.totalorder %s19, 1
      %p37 = por %p35, %p36
      %p38 = scmp.ne.s32.totalorder %s27, %s28
      %p39 = scmp.eq.s32.totalorder %s19, 0
      %p40 = por %p38, %p39
      %p41 = scmp.ne.s32.totalorder %s27, %s28
      %p42 = scmp.eq.s32.totalorder %s20, 1
      %p43 = por %p41, %p42
      %p45 = scmp.ne.s32.totalorder %s28, %s44
      %p46 = scmp.eq.s32.totalorder %s20, 0
      %p47 = por %p45, %p46
      %s49 = sadd.s32 %s48, 1
      %p52 = scmp.eq.s32.totalorder %s14, 1
      %p53 = scmp.ne.s32.totalorder %s48, %s50
      %p54 = scmp.eq.s32.totalorder %s14, 0
      %p55 = por %p53, %p54
      %p56 = scmp.ne.s32.totalorder %s48, %s50
      %p57 = scmp.eq.s32.totalorder %s19, 1
      %p58 = por %p56, %p57
      %p59 = scmp.ne.s32.totalorder %s50, %s51
      %p60 = scmp.eq.s32.totalorder %s19, 0
      %p61 = por %p59, %p60
      %p62 = scmp.ne.s32.totalorder %s50, %s51
      %p63 = scmp.eq.s32.totalorder %s20, 1
      %p64 = por %p62, %p63
      %p66 = scmp.ne.s32.totalorder %s51, %s65
      %p67 = scmp.eq.s32.totalorder %s20, 0
      %p68 = por %p66, %p67
      %s70 = sadd.s32 %s69, 1
      %p73 = scmp.eq.s32.totalorder %s14, 1
      %p74 = scmp.ne.s32.totalorder %s69, %s71
      %p75 = scmp.eq.s32.totalorder %s14, 0
      %p76 = por %p74, %p75
      %p77 = scmp.ne.s32.totalorder %s69, %s71
      %p78 = scmp.eq.s32.totalorder %s19, 1
      %p79 = por %p77, %p78
      %p80 = scmp.ne.s32.totalorder %s71, %s72
      %p81 = scmp.eq.s32.totalorder %s19, 0
      %p82 = por %p80, %p81
      %p83 = scmp.ne.s32.totalorder %s71, %s72
      %p84 = scmp.eq.s32.totalorder %s20, 1
      %p85 = por %p83, %p84
      %p87 = scmp.ne.s32.totalorder %s72, %s86
      %p88 = scmp.eq.s32.totalorder %s20, 0
      %p89 = por %p87, %p88
      %s91 = sadd.s32 %s90, 1
      %p94 = scmp.eq.s32.totalorder %s14, 1
      %p95 = scmp.ne.s32.totalorder %s90, %s92
      %p96 = scmp.eq.s32.totalorder %s14, 0
      %p97 = por %p95, %p96
      %p98 = scmp.ne.s32.totalorder %s90, %s92
      %p99 = scmp.eq.s32.totalorder %s19, 1
      %p100 = por %p98, %p99
      %p101 = scmp.ne.s32.totalorder %s92, %s93
      %p102 = scmp.eq.s32.totalorder %s19, 0
      %p103 = por %p101, %p102
      %p104 = scmp.ne.s32.totalorder %s92, %s93
      %p105 = scmp.eq.s32.totalorder %s20, 1
      %p106 = por %p104, %p105
      %p108 = scmp.ne.s32.totalorder %s93, %s107
      %p109 = scmp.eq.s32.totalorder %s20, 0
      %p110 = por %p108, %p109
      %s112 = sadd.s32 %s111, 1
      %p115 = scmp.eq.s32.totalorder %s14, 1
      %p116 = scmp.ne.s32.totalorder %s111, %s113
      %p117 = scmp.eq.s32.totalorder %s14, 0
      %p118 = por %p116, %p117
      %p119 = scmp.ne.s32.totalorder %s111, %s113
      %p120 = scmp.eq.s32.totalorder %s19, 1
      %p121 = por %p119, %p120
      %p122 = scmp.ne.s32.totalorder %s113, %s114
      %p123 = scmp.eq.s32.totalorder %s19, 0
      %p124 = por %p122, %p123
      %p125 = scmp.ne.s32.totalorder %s113, %s114
      %p126 = scmp.eq.s32.totalorder %s20, 1
      %p127 = por %p125, %p126
      %p129 = scmp.ne.s32.totalorder %s114, %s128
      %p130 = scmp.eq.s32.totalorder %s20, 0
      %p131 = por %p129, %p130
      %s132 = ssub.s32 %s14, %s21
      %p133 = scmp.eq.s32.totalorder %s132, 0
      %s135 = sadd.s32 %s134, 1
      %s136 = scalar_select %p133, %s134, %s135
      %p139 = pneg %p133
      %p140 = scmp.eq.s32.totalorder %s14, 1
      %p141 = por %p139, %p140
      %p142 = scmp.ne.s32.totalorder %s134, %s137
      %p143 = scmp.eq.s32.totalorder %s14, 0
      %p144 = por %p142, %p143
      %p145 = scmp.ne.s32.totalorder %s134, %s137
      %p146 = scmp.eq.s32.totalorder %s19, 1
      %p147 = por %p145, %p146
      %p148 = scmp.ne.s32.totalorder %s137, %s138
      %p149 = scmp.eq.s32.totalorder %s19, 0
      %p150 = por %p148, %p149
      %p151 = scmp.ne.s32.totalorder %s137, %s138
      %p152 = scmp.eq.s32.totalorder %s20, 1
      %p153 = por %p151, %p152
      %p155 = scmp.ne.s32.totalorder %s138, %s154
      %p156 = scmp.eq.s32.totalorder %s20, 0
      %p157 = por %p155, %p156
      %p158 = scmp.le.s32.totalorder 1, %s14
      %p159 = scmp.lt.s32.totalorder %s14, 3
      %p160 = pnand %p158, %p159
      %p161 = pneg %p160
      // Predicated region
      $region9: #{tpu_custom_call.1} parent=5 // pred_check
        _
      $region10: #{tpu_custom_call.1} parent=5 // pred_check_branch
        %163 = sbr.rel (%p160) target = $region12
      $region11: #{tpu_custom_call.1} parent=5 // pred_region
        %s164 = ssub.s32 %s14, 1
        // Predicated region
        $region13: #{tpu_custom_call.1} parent=11 // pred_check
          %p165 = pneg %p61
        $region14: #{tpu_custom_call.1} parent=11 // pred_check_branch
          %167 = sbr.rel (%p165) target = $region16
        $region15: #{tpu_custom_call.1} parent=11 // pred_region
          _
        $region16: #{tpu_custom_call.1} parent=11 // pred_fallthru
          _
        // Predicated region
        $region17: #{tpu_custom_call.1} parent=11 // pred_check
          %p168 = pneg %p82
        $region18: #{tpu_custom_call.1} parent=11 // pred_check_branch
          %170 = sbr.rel (%p168) target = $region20
        $region19: #{tpu_custom_call.1} parent=11 // pred_region
          _
        $region20: #{tpu_custom_call.1} parent=11 // pred_fallthru
          _
        // Predicated region
        $region21: #{tpu_custom_call.1} parent=11 // pred_check
          %p171 = pneg %p103
        $region22: #{tpu_custom_call.1} parent=11 // pred_check_branch
          %173 = sbr.rel (%p171) target = $region24
        $region23: #{tpu_custom_call.1} parent=11 // pred_region
          _
        $region24: #{tpu_custom_call.1} parent=11 // pred_fallthru
          _
        // Predicated region
        $region25: #{tpu_custom_call.1} parent=11 // pred_check
          %p174 = pneg %p124
        $region26: #{tpu_custom_call.1} parent=11 // pred_check_branch
          %176 = sbr.rel (%p174) target = $region28
        $region27: #{tpu_custom_call.1} parent=11 // pred_region
          _
        $region28: #{tpu_custom_call.1} parent=11 // pred_fallthru
          _
      $region12: #{tpu_custom_call.1} parent=5 // pred_fallthru
        _
      %p177 = scmp.lt.s32.totalorder %s14, 2
      // Predicated region
      $region29: #{tpu_custom_call.1} parent=5 // pred_check
        %p178 = pneg %p177
      $region30: #{tpu_custom_call.1} parent=5 // pred_check_branch
        %180 = sbr.rel (%p178) target = $region32
      $region31: #{tpu_custom_call.1} parent=5 // pred_region
        // Predicated region
        $region33: #{tpu_custom_call.1} parent=31 // pred_check
          %p181 = pneg %p34
        $region34: #{tpu_custom_call.1} parent=31 // pred_check_branch
          %183 = sbr.rel (%p181) target = $region36
        $region35: #{tpu_custom_call.1} parent=31 // pred_region
          %p184 = scmp.lt.s32.totalorder %s14, 1
          %s185 = scalar_select %p184, %s14, 1
          %s186 = smul.addr %s185, 8
          %s187 = scalar_lea.vmem %s0, %s186
        $region36: #{tpu_custom_call.1} parent=31 // pred_fallthru
          _
      $region32: #{tpu_custom_call.1} parent=5 // pred_fallthru
        _
      %p188 = scmp.le.s32.totalorder 1, %s14
      %p189 = scmp.lt.s32.totalorder %s14, 3
      %p190 = pnand %p188, %p189
      %p191 = pneg %p190
      // Predicated region
      $region37: #{tpu_custom_call.1} parent=5 // pred_check
        _
      $region38: #{tpu_custom_call.1} parent=5 // pred_check_branch
        %193 = sbr.rel (%p190) target = $region40
      $region39: #{tpu_custom_call.1} parent=5 // pred_region
        %s194 = ssub.s32 %s14, 1
        %p195 = scmp.lt.s32.totalorder %s19, 1
        %s196 = scalar_select %p195, %s19, 1
        %s197 = smul.addr %s196, 8
        %s198 = scalar_lea.vmem %s0, %s197
        %p199 = pneg %p40
        %p200 = pneg %p37
        %p201 = pneg %p61
        %p202 = pneg %p58
        %p203 = pneg %p82
        %p204 = pneg %p79
        %p205 = pneg %p103
        %p206 = pneg %p100
        %p207 = pneg %p124
        %p208 = pneg %p121
        %p209 = pneg %p150
        %p210 = pneg %p147
        %s211 = sand.u32 %s137, 1
        %s212 = scalar_lea.sflag [#allocation3], %s211
        %s213 = sand.u32 %s137, 1
        %s214 = smul.addr %s213, 8
        %s215 = scalar_lea.vmem [#allocation2], %s214
        %p216 = scmp.lt.s32.totalorder %s19, 1
        %s217 = scalar_select %p216, %s19, 1
        %s218 = smul.addr %s217, 8
        %s219 = scalar_lea.vmem %s0, %s218
        %v221 = vld [vmem:[%s219] sm:$0xff]
        %v222 = vpack.c.bf16 %v221, %v221
        %v223 = vld [vmem:[%s1] sm:$0xf]
        %v224 = vld [vmem:[%s1 + $0x4] sm:$0xf]
        %v225 = vld [vmem:[%s1 + $0x8] sm:$0xf]
        %v226 = vld [vmem:[%s1 + $0xc] sm:$0xf]
        %v227 = vld [vmem:[%s2] sm:$0x1]
        %v229 = vlaneseq
        %v230 = vshrl.u32 %v229, 7
        %v231 = vsub.s32 0, %v230
        %v232 = vrot.slane %v227, %v231
        %v238 = vunpack.c.l.b16 %v223
        %v239 = vunpack.c.l.b16 %v224
        %v240 = vunpack.c.l.b16 %v225
        %v241 = vunpack.c.l.b16 %v226
        %v242 = vpack.c.b16 %v239, %v238
        %v243 = vpack.c.b16 %v241, %v240
        %vm246 = vcmask 261120
        %v248 = vsel %vm246, %v222, 0
        %250 = vmatprep.subr.bf16.mxu0 0
        %251 = vmatpush1.bf16.msra.mxu0 %v242
        %252 = vmatprep.subr.bf16.mxu0 0
        %253 = vmatpush1.bf16.msra.mxu0 %v243
        %254 = vmatprep.subr.bf16.mxu0 0
        %255 = vmatpush1.bf16.msra.mxu0 0
        %256 = vmatprep.subr.bf16.mxu0 0
        %257 = vmatpush1.bf16.msra.mxu0 0
        %258 = vmatprep.subr.bf16.mxu0 0
        %259 = vmatpush1.bf16.msra.mxu0 0
        %260 = vmatprep.subr.bf16.mxu0 0
        %261 = vmatpush1.bf16.msra.mxu0 0
        %262 = vmatprep.subr.bf16.mxu0 0
        %263 = vmatpush1.bf16.msra.mxu0 0
        %264 = vmatprep.subr.bf16.mxu0 0
        %265 = vmatpush1.bf16.msra.mxu0 0
        %266 = vmatprep.subr.bf16.mxu0 0
        %267 = vmatpush1.bf16.msra.mxu0 0
        %268 = vmatprep.subr.bf16.mxu0 0
        %269 = vmatpush1.bf16.msra.mxu0 0
        %270 = vmatprep.subr.bf16.mxu0 0
        %271 = vmatpush1.bf16.msra.mxu0 0
        %272 = vmatprep.subr.bf16.mxu0 0
        %273 = vmatpush1.bf16.msra.mxu0 0
        %274 = vmatprep.subr.bf16.mxu0 0
        %275 = vmatpush1.bf16.msra.mxu0 0
        %276 = vmatprep.subr.bf16.mxu0 0
        %277 = vmatpush1.bf16.msra.mxu0 0
        %278 = vmatprep.subr.bf16.mxu0 0
        %279 = vmatpush1.bf16.msra.mxu0 0
        %280 = vmatprep.subr.bf16.mxu0 0
        %281 = vmatpush1.bf16.msra.mxu0 0
        %282 = vmatprep.mubr.bf16.mxu0 0
        %283 = vmatmul.mubr.bf16.gmra.mrb[0].mxu0 %v248
        %v284 = vpop.f32.mrb[0].mxu0
        %v285 = vadd.f32 %v232, %v284
        %v286 = vpop.f32.mrb[0].mxu0
        %v287 = vpop.f32.mrb[0].mxu0
        %v288 = vpop.f32.mrb[0].mxu0
        %289 = vdwg.mxu0
        %v290 = vmax.f32 %v285, 0.0
        %v291 = vpack.c.bf16 %v290, %v290
        %v292 = vld [vmem:[%s3] sm:$0xf]
        %v293 = vld [vmem:[%s4] sm:$0x1]
        %v295 = vlaneseq
        %v296 = vshrl.u32 %v295, 7
        %v297 = vsub.s32 0, %v296
        %v298 = vrot.slane %v293, %v297
        %vm300 = vcmask 64512
        %v302 = vsel %vm300, %v291, 0
        %vm304 = vcmask 1043456
        %v306 = vsel %vm304, %v292, 0
        %308 = vmatprep.subr.bf16.mxu0 0
        %309 = vmatpush1.bf16.msra.mxu0 %v306
        %310 = vmatprep.subr.bf16.mxu0 0
        %311 = vmatpush1.bf16.msra.mxu0 0
        %312 = vmatprep.subr.bf16.mxu0 0
        %313 = vmatpush1.bf16.msra.mxu0 0
        %314 = vmatprep.subr.bf16.mxu0 0
        %315 = vmatpush1.bf16.msra.mxu0 0
        %316 = vmatprep.subr.bf16.mxu0 0
        %317 = vmatpush1.bf16.msra.mxu0 0
        %318 = vmatprep.subr.bf16.mxu0 0
        %319 = vmatpush1.bf16.msra.mxu0 0
        %320 = vmatprep.subr.bf16.mxu0 0
        %321 = vmatpush1.bf16.msra.mxu0 0
        %322 = vmatprep.subr.bf16.mxu0 0
        %323 = vmatpush1.bf16.msra.mxu0 0
        %324 = vmatprep.subr.bf16.mxu0 0
        %325 = vmatpush1.bf16.msra.mxu0 0
        %326 = vmatprep.subr.bf16.mxu0 0
        %327 = vmatpush1.bf16.msra.mxu0 0
        %328 = vmatprep.subr.bf16.mxu0 0
        %329 = vmatpush1.bf16.msra.mxu0 0
        %330 = vmatprep.subr.bf16.mxu0 0
        %331 = vmatpush1.bf16.msra.mxu0 0
        %332 = vmatprep.subr.bf16.mxu0 0
        %333 = vmatpush1.bf16.msra.mxu0 0
        %334 = vmatprep.subr.bf16.mxu0 0
        %335 = vmatpush1.bf16.msra.mxu0 0
        %336 = vmatprep.subr.bf16.mxu0 0
        %337 = vmatpush1.bf16.msra.mxu0 0
        %338 = vmatprep.subr.bf16.mxu0 0
        %339 = vmatpush1.bf16.msra.mxu0 0
        %340 = vmatprep.mubr.bf16.mxu0 0
        %341 = vmatmul.mubr.bf16.gmra.mrb[0].mxu0 %v302
        %v342 = vpop.f32.mrb[0].mxu0
        %v343 = vadd.f32 %v298, %v342
        %v344 = vpop.f32.mrb[0].mxu0
        %v345 = vpop.f32.mrb[0].mxu0
        %v346 = vpop.f32.mrb[0].mxu0
        %347 = vdwg.mxu0
        %v348 = vxor.u32 %v343, 2147483648
        %v349 = vmul.f32 %v348, 1.442695
        %v350 = vpow.pop %v349
        %v351 = vadd.f32 %v350, 1.0
        %v352 = vrcp.pop %v351
        %v353 = vmul.f32 1.0, %v352
        %v354 = vmul.f32 %v221, %v353
        %355 = vst.msk [vmem:[%s215] sm:$0xff] %vm246, %v354
        %s356 = sand.u32 %s137, 1
        %s357 = scalar_lea.sflag [#allocation3], %s356
        %s358 = sand.u32 %s137, 1
        %s359 = smul.addr %s358, 8
        %s360 = scalar_lea.vmem [#allocation2], %s359
        // Predicated region
        $region41: #{tpu_custom_call.1} parent=39 // pred_check
          %p361 = pneg %p147
        $region42: #{tpu_custom_call.1} parent=39 // pred_check_branch
          %363 = sbr.rel (%p361) target = $region44
        $region43: #{tpu_custom_call.1} parent=39 // pred_region
          %s365 = ssub.s32 128, 128
          %366 = vsyncadd %s357, %s365
          %s367 = smul.addr %s19, 128
          %s368 = scalar_lea.hbm %s5, %s367
          %s370 = sshll.u32 %s360, 4
          %s371 = int_to_ptr.vmem [resolvable:$true] %s370
          %373 = dma.vmem_to_hbm [thread:$0]  %s371, 128, %s368, %s357
        $region44: #{tpu_custom_call.1} parent=39 // pred_fallthru
          _
      $region40: #{tpu_custom_call.1} parent=5 // pred_fallthru
        _
      %p374 = scmp.le.s32.totalorder 2, %s14
      // Predicated region
      $region45: #{tpu_custom_call.1} parent=5 // pred_check
        %p375 = pneg %p374
      $region46: #{tpu_custom_call.1} parent=5 // pred_check_branch
        %377 = sbr.rel (%p375) target = $region48
      $region47: #{tpu_custom_call.1} parent=5 // pred_region
        %s378 = ssub.s32 %s14, 2
        // Predicated region
        $region49: #{tpu_custom_call.1} parent=47 // pred_check
          %p379 = pneg %p153
        $region50: #{tpu_custom_call.1} parent=47 // pred_check_branch
          %381 = sbr.rel (%p379) target = $region52
        $region51: #{tpu_custom_call.1} parent=47 // pred_region
          %s382 = sand.u32 %s138, 1
          %s383 = scalar_lea.sflag [#allocation3], %s382
          %s384 = sand.u32 %s138, 1
          %s385 = smul.addr %s384, 8
          %s386 = scalar_lea.vmem [#allocation2], %s385
          %387 = dma.done %s383, 128
        $region52: #{tpu_custom_call.1} parent=47 // pred_fallthru
          _
      $region48: #{tpu_custom_call.1} parent=5 // pred_fallthru
        _
    $region6: #{tpu_custom_call.1} parent=1 // loop_footer
      %s18 = sadd.s32 1, %s14
    $region7: #{tpu_custom_call.1} parent=1 // loop_footer_branch
      %13 = sbr.rel target = $region3
    $region8: #{tpu_custom_call.1} parent=1 // loop_exit
      _
    %388 = vsyncpa [#allocation3], 1
    %s389 = scalar_lea.sflag [#allocation3], 1
    %390 = vsyncpa %s389, 1

</llo_original>
